<compile_context>
chip_gen: v5e
topology: v5e:2x2
jax: 0.10.0
libtpu: 0.0.40
codegen_flags: <defaults>
</compile_context>

<pallas_src>
import functools

import jax
import jax.numpy as jnp
from jax import lax
from jax.experimental import pallas as pl
from jax.experimental.pallas import tpu as pltpu


# ----------------------------------------------------------------------------
# Pallas kernel: one (C, Bt*H*W) lane-dense slab per grid step.
# ----------------------------------------------------------------------------
def _bam_kernel(*refs, W, HW, Bt, C, Cr, taps, offs, use_slices):
    f32, bf16 = jnp.float32, jnp.bfloat16
    if use_slices:
        x_ref, masks_ref, prm_ref, out_ref = refs
        pool_ref = bcast_ref = None
    else:
        x_ref, pool_ref, bcast_ref, masks_ref, prm_ref, out_ref = refs

    xv = x_ref[...].astype(f32)                       # (C, Nt) lane-dense, f32
    Nt = xv.shape[1]
    x_bf = xv.astype(bf16)                            # bf16 copy for MXU operands
    masks = masks_ref[...]                            # (9, Nt) f32 {0,1}
    prm = prm_ref[...]                                # (Rp, Wp) packed params, f32

    def blk(i, rows, cols):
        # weight slice -> bf16 MXU operand; bias column stays f32.
        o = offs[i]
        return (prm[o:o + rows, :cols].astype(bf16),
                prm[o:o + rows, cols:cols + 1])

    w_fc1, b_fc1 = blk(0, Cr, C)
    w_fc2, b_fc2 = blk(1, C, Cr)
    w_c1, b_c1 = blk(2, Cr, C)
    w_c2, b_c2 = blk(3, Cr, 9 * Cr)                   # tap-major (Cr, 9*Cr)
    w_c3, b_c3 = blk(4, Cr, 9 * Cr)
    w_c4, b_c4 = blk(5, 1, Cr)

    # ---------------- Channel attention: GAP -> FC -> ReLU -> FC -------------
    if use_slices:
        # Per-batch-segment mean via XLU reduction; no dense pooling matmul.
        segs = [jnp.sum(xv[:, b * HW:(b + 1) * HW], axis=1, keepdims=True)
                for b in range(Bt)]
        m = jnp.concatenate(segs, axis=1) * (1.0 / HW)                     # (C, Bt)
    else:
        m = jnp.dot(x_bf, pool_ref[...].astype(bf16),
                    preferred_element_type=f32)                            # (C, Bt)
    h = jnp.maximum(
        jnp.dot(w_fc1, m.astype(bf16), preferred_element_type=f32) + b_fc1, 0.0)
    cam = jnp.dot(w_fc2, h.astype(bf16), preferred_element_type=f32) + b_fc2  # (C, Bt)

    # ---------------- Spatial attention --------------------------------------
    # conv1: 1x1, C -> Cr, ReLU (single MXU matmul).
    s = jnp.maximum(
        jnp.dot(w_c1, x_bf, preferred_element_type=f32) + b_c1, 0.0)       # (Cr, Nt)

    def dilated3x3(a, wt, bc):
        # 3x3 conv, dilation=d, padding=d: roll (XLU) + precomputed edge mask
        # per tap, stack all 9 taps into one (9*Cr, Nt) operand and issue a
        # single K=9*Cr MXU matmul (accumulation inside the MXU).
        cols = []
        for k, (dy, dx) in enumerate(taps):
            sh = (-(dy * W + dx)) % Nt
            col = a if sh == 0 else pltpu.roll(a, sh, axis=1)
            if dy != 0 or dx != 0:
                col = col * masks[k][None, :]
            cols.append(col)
        stacked = jnp.concatenate(cols, axis=0).astype(bf16)               # (9*Cr, Nt)
        return jnp.maximum(
            jnp.dot(wt, stacked, preferred_element_type=f32) + bc, 0.0)

    s = dilated3x3(s, w_c2, b_c2)                                          # conv2 + ReLU
    s = dilated3x3(s, w_c3, b_c3)                                          # conv3 + ReLU

    # conv4: 1x1, Cr -> 1 (spatial attention map).
    sam = jnp.dot(w_c4, s.astype(bf16), preferred_element_type=f32) + b_c4  # (1, Nt)

    # ---------------- Combine: sigmoid(cam + sam) * x + x --------------------
    if use_slices:
        # Per-segment column splat of cam (free VPU broadcast), aligned stores.
        for b in range(Bt):
            xs = xv[:, b * HW:(b + 1) * HW]
            z = cam[:, b:b + 1] + sam[:, b * HW:(b + 1) * HW]
            scale = pl.reciprocal(1.0 + jnp.exp(-z), approx=True)          # EUP only
            out_ref[:, b * HW:(b + 1) * HW] = (scale * xs + xs).astype(out_ref.dtype)
    else:
        cam_full = jnp.dot(cam.astype(bf16), bcast_ref[...].astype(bf16),
                           preferred_element_type=f32)                     # (C, Nt)
        z = cam_full + sam
        scale = pl.reciprocal(1.0 + jnp.exp(-z), approx=True)
        out_ref[...] = (scale * xv + xv).astype(out_ref.dtype)


# ----------------------------------------------------------------------------
# Wrapper helpers.
# ----------------------------------------------------------------------------
def _full_spec(shape):
    nd = len(shape)
    return pl.BlockSpec(shape, lambda i, _nd=nd: (0,) * _nd)


def _pack_params(p, C, Cr):
    """Pack all weights + biases into one f32 slab; bias is the last column of
    each 8-aligned row block. Returns (packed, row_offsets)."""
    f32 = jnp.float32

    def conv3_flat(w):  # (Cr, Cr, 3, 3) -> (Cr, 9*Cr), tap-major columns
        w9 = jnp.transpose(w, (2, 3, 0, 1)).reshape(9, Cr, Cr)
        return jnp.transpose(w9, (1, 0, 2)).reshape(Cr, 9 * Cr)

    blocks = [
        (p["fc1_w"].reshape(Cr, C), p["fc1_b"]),
        (p["fc2_w"].reshape(C, Cr), p["fc2_b"]),
        (p["c1_w"].reshape(Cr, C), p["c1_b"]),
        (conv3_flat(p["c2_w"]), p["c2_b"]),
        (conv3_flat(p["c3_w"]), p["c3_b"]),
        (p["c4_w"].reshape(1, Cr), p["c4_b"]),
    ]
    max_cols = max(w.shape[1] for w, _ in blocks) + 1
    Wp = ((max_cols + 127) // 128) * 128
    offs, r = [], 0
    for w, _ in blocks:
        offs.append(r)
        r += ((w.shape[0] + 7) // 8) * 8
    Rp = max(((r + 7) // 8) * 8, 8)
    P = jnp.zeros((Rp, Wp), f32)
    for (w, b), o in zip(blocks, offs):
        wb = jnp.concatenate([w.astype(f32), b.reshape(-1, 1).astype(f32)], axis=1)
        P = P.at[o:o + w.shape[0], :wb.shape[1]].set(wb)
    return P, tuple(offs)


def bam_block(x, p, *, dilation=4, block_batch=None):
    B, C, H, W = x.shape
    Cr = p["fc1_w"].shape[0]
    d = dilation
    HW = H * W
    use_slices = (HW % 128 == 0)

    # ---- generation-aware VMEM sizing ---------------------------------------
    try:
        vmem_cap = int(getattr(pltpu.get_tpu_info(), "vmem_capacity_bytes",
                               64 * 1024 * 1024))
    except Exception:
        vmem_cap = 64 * 1024 * 1024
    if vmem_cap >= 100 * 1024 * 1024:          # v5e / v6e: 128 MiB physical
        budget, vmem_limit = 48 * 1024 * 1024, 96 * 1024 * 1024
    else:                                      # v7x: 64 MiB physical
        budget, vmem_limit = 20 * 1024 * 1024, 48 * 1024 * 1024

    # conservative per-batch-element VMEM estimate (blocks + intermediates)
    per_b = (16 * C + 96 * max(Cr, 1) + 64) * HW * 4

    # ---- pick per-step batch tile Bt ----------------------------------------
    if block_batch is not None:
        Bt = block_batch
        assert B % Bt == 0
        assert Bt == B or (Bt * HW) % 128 == 0, "Bt*H*W must be lane-aligned"
    else:
        cap = max(1, budget // max(per_b, 1))
        divs = [bt for bt in range(1, B + 1) if B % bt == 0]
        # (8,128) rule: a partial block needs a 128-aligned lane extent.
        aligned = [bt for bt in divs if bt == B or (bt * HW) % 128 == 0] or [B]
        fit = [bt for bt in aligned if bt <= cap] or [min(aligned)]
        # Prefer >= 2 grid steps (v7x megacore sharding + DMA/compute overlap),
        # ideally an even number of steps; then take the largest tile.
        multi = [bt for bt in fit if B // bt >= 2] or fit
        even = [bt for bt in multi if (B // bt) % 2 == 0] or multi
        Bt = max(even)
    Nt = Bt * HW

    # ---- wrapper-side layout plumbing ---------------------------------------
    x2d = jnp.transpose(x, (1, 0, 2, 3)).reshape(C, B * HW)

    # Edge-validity masks for the 9 dilated-conv taps (tiled per batch seg).
    taps = tuple((dy, dx) for dy in (-d, 0, d) for dx in (-d, 0, d))
    yy, xx = jnp.meshgrid(jnp.arange(H), jnp.arange(W), indexing="ij")
    mrows = []
    for dy, dx in taps:
        ok = (yy + dy >= 0) & (yy + dy < H) & (xx + dx >= 0) & (xx + dx < W)
        mrows.append(jnp.tile(ok.reshape(HW), (Bt,)))
    masks = jnp.stack(mrows, axis=0).astype(jnp.float32)       # (9, Nt)

    P, offs = _pack_params(p, C, Cr)

    kernel = functools.partial(_bam_kernel, W=W, HW=HW, Bt=Bt, C=C, Cr=Cr,
                               taps=taps, offs=offs, use_slices=use_slices)

    x_spec = pl.BlockSpec((C, Nt), lambda i: (0, i))
    if use_slices:
        in_specs = [x_spec, _full_spec(masks.shape), _full_spec(P.shape)]
        args = (x2d, masks, P)
    else:
        # Matmul fallback for spatial sizes that are not lane-aligned.
        eye = jnp.eye(Bt, dtype=jnp.float32)
        pool = jnp.repeat(eye, HW, axis=0) / float(HW)          # (Nt, Bt)
        bcast = jnp.repeat(eye, HW, axis=1)                     # (Bt, Nt)
        in_specs = [x_spec, _full_spec(pool.shape), _full_spec(bcast.shape),
                    _full_spec(masks.shape), _full_spec(P.shape)]
        args = (x2d, pool, bcast, masks, P)

    y2d = pl.pallas_call(
        kernel,
        out_shape=jax.ShapeDtypeStruct((C, B * HW), x.dtype),
        grid_spec=pltpu.PrefetchScalarGridSpec(
            num_scalar_prefetch=0,
            grid=(B // Bt,),
            in_specs=in_specs,
            out_specs=x_spec),
        compiler_params=pltpu.CompilerParams(
            dimension_semantics=("parallel",),
            vmem_limit_bytes=vmem_limit),
    )(*args)

    return jnp.transpose(y2d.reshape(C, B, H, W), (1, 0, 2, 3))


# ----------------------------------------------------------------------------
# Pure-JAX reference (mirrors the PyTorch module exactly).
# ----------------------------------------------------------------------------
def bam_ref(x, p, *, dilation=4):
    dn = ("NCHW", "OIHW", "NCHW")

    def conv(inp, w, b, pad, dil):
        out = lax.conv_general_dilated(inp, w, (1, 1), pad,
                                       rhs_dilation=dil, dimension_numbers=dn)
        return out + b[None, :, None, None]

    # channel attention
    m = jnp.mean(x, axis=(2, 3))                               # (B, C)
    h = jax.nn.relu(m @ p["fc1_w"].T + p["fc1_b"])
    cam = (h @ p["fc2_w"].T + p["fc2_b"])[:, :, None, None]    # (B, C, 1, 1)

    # spatial attention
    s = jax.nn.relu(conv(x, p["c1_w"], p["c1_b"], "VALID", (1, 1)))
    s = jax.nn.relu(conv(s, p["c2_w"], p["c2_b"],
                         [(dilation, dilation)] * 2, (dilation, dilation)))
    s = jax.nn.relu(conv(s, p["c3_w"], p["c3_b"],
                         [(dilation, dilation)] * 2, (dilation, dilation)))
    sam = conv(s, p["c4_w"], p["c4_b"], "VALID", (1, 1))        # (B, 1, H, W)

    scale = jax.nn.sigmoid(cam + sam)
    return scale * x + x


# ----------------------------------------------------------------------------
def make_params(key, C, Cr):
    ks = jax.random.split(key, 12)
    n = lambda k, s, scale=0.1: scale * jax.random.normal(k, s, jnp.float32)
    return {
        "fc1_w": n(ks[0], (Cr, C)),       "fc1_b": n(ks[1], (Cr,)),
        "fc2_w": n(ks[2], (C, Cr)),       "fc2_b": n(ks[3], (C,)),
        "c1_w":  n(ks[4], (Cr, C, 1, 1)), "c1_b":  n(ks[5], (Cr,)),
        "c2_w":  n(ks[6], (Cr, Cr, 3, 3)),"c2_b":  n(ks[7], (Cr,)),
        "c3_w":  n(ks[8], (Cr, Cr, 3, 3)),"c3_b":  n(ks[9], (Cr,)),
        "c4_w":  n(ks[10], (1, Cr, 1, 1)),"c4_b":  n(ks[11], (1,)),
    }


if __name__ == "__main__":
    B, C, H, W = 2, 32, 16, 16       # num_channels=32, reduction_ratio=16 -> Cr=2
    reduction_ratio, dilation = 16, 4
    Cr = C // reduction_ratio

    key = jax.random.PRNGKey(0)
    kx, kp = jax.random.split(key)
    x = jax.random.normal(kx, (B, C, H, W), jnp.float32)
    params = make_params(kp, C, Cr)

    out = bam_block(x, params, dilation=dilation)
    jax.block_until_ready(out)

    ref = bam_ref(x, params, dilation=dilation)
    assert out.shape == (B, C, H, W)
    # bf16 MXU operands + approx reciprocal: compare with a relaxed tolerance.
    assert jnp.allclose(out, ref, atol=3e-2, rtol=3e-2), (
        f"max abs diff {float(jnp.max(jnp.abs(out - ref)))}")
    print("KERNEL_OK")
</pallas_src>

<mosaic_0001>
module attributes {stable_mosaic.version = 11 : i64} {
  func.func @_bam_kernel(%arg0: i32, %arg1: memref<32x256xf32, #tpu.memory_space<vmem>>, %arg2: memref<9x256xf32, #tpu.memory_space<vmem>>, %arg3: memref<72x128xf32, #tpu.memory_space<vmem>>, %arg4: memref<32x256xf32, #tpu.memory_space<vmem>>) attributes {dimension_semantics = [#tpu.dimension_semantics<parallel>], iteration_bounds = array<i64: 2>, scalar_prefetch = 0 : i64, scratch_operands = 0 : i64, tpu.core_type = #tpu.core_type<tc>, window_params = [{transform_indices = @transform_0, window_bounds = array<i64: 32, 256>}, {pipeline_mode = #tpu.pipeline_mode<synchronous>, transform_indices = @transform_1, window_bounds = array<i64: 9, 256>}, {pipeline_mode = #tpu.pipeline_mode<synchronous>, transform_indices = @transform_2, window_bounds = array<i64: 72, 128>}, {transform_indices = @transform_3, window_bounds = array<i64: 32, 256>}]} {
    %c0 = arith.constant 0 : index
    %c0_0 = arith.constant 0 : index
    %0 = vector.load %arg1[%c0, %c0_0] : memref<32x256xf32, #tpu.memory_space<vmem>>, vector<32x256xf32>
    %1 = arith.truncf %0 : vector<32x256xf32> to vector<32x256xbf16>
    %c0_1 = arith.constant 0 : index
    %c0_2 = arith.constant 0 : index
    %2 = vector.load %arg2[%c0_1, %c0_2] : memref<9x256xf32, #tpu.memory_space<vmem>>, vector<9x256xf32>
    %c0_3 = arith.constant 0 : index
    %c0_4 = arith.constant 0 : index
    %3 = vector.load %arg3[%c0_3, %c0_4] : memref<72x128xf32, #tpu.memory_space<vmem>>, vector<72x128xf32>
    %4 = vector.extract_strided_slice %3 {offsets = [0, 0], sizes = [2, 32], strides = [1, 1]} : vector<72x128xf32> to vector<2x32xf32>
    %5 = arith.truncf %4 : vector<2x32xf32> to vector<2x32xbf16>
    %6 = vector.extract_strided_slice %3 {offsets = [0, 32], sizes = [2, 1], strides = [1, 1]} : vector<72x128xf32> to vector<2x1xf32>
    %7 = vector.extract_strided_slice %3 {offsets = [8, 0], sizes = [32, 2], strides = [1, 1]} : vector<72x128xf32> to vector<32x2xf32>
    %8 = arith.truncf %7 : vector<32x2xf32> to vector<32x2xbf16>
    %9 = vector.extract_strided_slice %3 {offsets = [8, 2], sizes = [32, 1], strides = [1, 1]} : vector<72x128xf32> to vector<32x1xf32>
    %10 = vector.extract_strided_slice %3 {offsets = [40, 0], sizes = [2, 32], strides = [1, 1]} : vector<72x128xf32> to vector<2x32xf32>
    %11 = arith.truncf %10 : vector<2x32xf32> to vector<2x32xbf16>
    %12 = vector.extract_strided_slice %3 {offsets = [40, 32], sizes = [2, 1], strides = [1, 1]} : vector<72x128xf32> to vector<2x1xf32>
    %13 = vector.extract_strided_slice %3 {offsets = [48, 0], sizes = [2, 18], strides = [1, 1]} : vector<72x128xf32> to vector<2x18xf32>
    %14 = arith.truncf %13 : vector<2x18xf32> to vector<2x18xbf16>
    %15 = vector.extract_strided_slice %3 {offsets = [48, 18], sizes = [2, 1], strides = [1, 1]} : vector<72x128xf32> to vector<2x1xf32>
    %16 = vector.extract_strided_slice %3 {offsets = [56, 0], sizes = [2, 18], strides = [1, 1]} : vector<72x128xf32> to vector<2x18xf32>
    %17 = arith.truncf %16 : vector<2x18xf32> to vector<2x18xbf16>
    %18 = vector.extract_strided_slice %3 {offsets = [56, 18], sizes = [2, 1], strides = [1, 1]} : vector<72x128xf32> to vector<2x1xf32>
    %19 = vector.extract_strided_slice %3 {offsets = [64, 0], sizes = [1, 2], strides = [1, 1]} : vector<72x128xf32> to vector<1x2xf32>
    %20 = arith.truncf %19 : vector<1x2xf32> to vector<1x2xbf16>
    %21 = vector.extract_strided_slice %3 {offsets = [64, 2], sizes = [1, 1], strides = [1, 1]} : vector<72x128xf32> to vector<1x1xf32>
    %cst = arith.constant dense<0.000000e+00> : vector<32xf32>
    %22 = vector.multi_reduction <add>, %0, %cst [1] : vector<32x256xf32> to vector<32xf32>
    %23 = vector.shape_cast %22 : vector<32xf32> to vector<32x1xf32>
    %cst_5 = arith.constant 3.906250e-03 : f32
    %24 = vector.broadcast %cst_5 : f32 to vector<32x1xf32>
    %25 = arith.mulf %23, %24 : vector<32x1xf32>
    %26 = arith.truncf %25 : vector<32x1xf32> to vector<32x1xbf16>
    %cst_6 = arith.constant dense<0.000000e+00> : vector<2x1xf32>
    %27 = tpu.matmul %5, %26, %cst_6 {dimension_numbers = #tpu.dot_dimension_numbers<[1], [0], [0], [1], [0, 0, 1, 1], [], []>} : vector<2x32xbf16>, vector<32x1xbf16>, vector<2x1xf32> -> vector<2x1xf32>
    %28 = arith.addf %27, %6 : vector<2x1xf32>
    %cst_7 = arith.constant 0.000000e+00 : f32
    %29 = vector.broadcast %cst_7 : f32 to vector<2x1xf32>
    %30 = arith.maximumf %28, %29 : vector<2x1xf32>
    %31 = arith.truncf %30 : vector<2x1xf32> to vector<2x1xbf16>
    %cst_8 = arith.constant dense<0.000000e+00> : vector<32x1xf32>
    %32 = tpu.matmul %8, %31, %cst_8 {dimension_numbers = #tpu.dot_dimension_numbers<[1], [0], [0], [1], [0, 0, 1, 1], [], []>} : vector<32x2xbf16>, vector<2x1xbf16>, vector<32x1xf32> -> vector<32x1xf32>
    %33 = arith.addf %32, %9 : vector<32x1xf32>
    %cst_9 = arith.constant dense<0.000000e+00> : vector<2x256xf32>
    %34 = tpu.matmul %11, %1, %cst_9 {dimension_numbers = #tpu.dot_dimension_numbers<[1], [0], [0], [1], [0, 0, 1, 1], [], []>} : vector<2x32xbf16>, vector<32x256xbf16>, vector<2x256xf32> -> vector<2x256xf32>
    %35 = vector.broadcast %12 : vector<2x1xf32> to vector<2x256xf32>
    %36 = arith.addf %34, %35 : vector<2x256xf32>
    %cst_10 = arith.constant 0.000000e+00 : f32
    %37 = vector.broadcast %cst_10 : f32 to vector<2x256xf32>
    %38 = arith.maximumf %36, %37 : vector<2x256xf32>
    %c68_i32 = arith.constant 68 : i32
    %39 = tpu.dynamic_rotate %38 by %c68_i32 dim 1 : vector<2x256xf32>, i32 -> vector<2x256xf32>
    %40 = vector.extract_strided_slice %2 {offsets = [0, 0], sizes = [1, 256], strides = [1, 1]} : vector<9x256xf32> to vector<1x256xf32>
    %41 = vector.shape_cast %40 : vector<1x256xf32> to vector<256xf32>
    %42 = vector.shape_cast %41 : vector<256xf32> to vector<1x256xf32>
    %43 = vector.broadcast %42 : vector<1x256xf32> to vector<2x256xf32>
    %44 = arith.mulf %39, %43 : vector<2x256xf32>
    %c64_i32 = arith.constant 64 : i32
    %45 = tpu.dynamic_rotate %38 by %c64_i32 dim 1 : vector<2x256xf32>, i32 -> vector<2x256xf32>
    %46 = vector.extract_strided_slice %2 {offsets = [1, 0], sizes = [1, 256], strides = [1, 1]} : vector<9x256xf32> to vector<1x256xf32>
    %47 = vector.shape_cast %46 : vector<1x256xf32> to vector<256xf32>
    %48 = vector.shape_cast %47 : vector<256xf32> to vector<1x256xf32>
    %49 = vector.broadcast %48 : vector<1x256xf32> to vector<2x256xf32>
    %50 = arith.mulf %45, %49 : vector<2x256xf32>
    %c60_i32 = arith.constant 60 : i32
    %51 = tpu.dynamic_rotate %38 by %c60_i32 dim 1 : vector<2x256xf32>, i32 -> vector<2x256xf32>
    %52 = vector.extract_strided_slice %2 {offsets = [2, 0], sizes = [1, 256], strides = [1, 1]} : vector<9x256xf32> to vector<1x256xf32>
    %53 = vector.shape_cast %52 : vector<1x256xf32> to vector<256xf32>
    %54 = vector.shape_cast %53 : vector<256xf32> to vector<1x256xf32>
    %55 = vector.broadcast %54 : vector<1x256xf32> to vector<2x256xf32>
    %56 = arith.mulf %51, %55 : vector<2x256xf32>
    %c4_i32 = arith.constant 4 : i32
    %57 = tpu.dynamic_rotate %38 by %c4_i32 dim 1 : vector<2x256xf32>, i32 -> vector<2x256xf32>
    %58 = vector.extract_strided_slice %2 {offsets = [3, 0], sizes = [1, 256], strides = [1, 1]} : vector<9x256xf32> to vector<1x256xf32>
    %59 = vector.shape_cast %58 : vector<1x256xf32> to vector<256xf32>
    %60 = vector.shape_cast %59 : vector<256xf32> to vector<1x256xf32>
    %61 = vector.broadcast %60 : vector<1x256xf32> to vector<2x256xf32>
    %62 = arith.mulf %57, %61 : vector<2x256xf32>
    %c252_i32 = arith.constant 252 : i32
    %63 = tpu.dynamic_rotate %38 by %c252_i32 dim 1 : vector<2x256xf32>, i32 -> vector<2x256xf32>
    %64 = vector.extract_strided_slice %2 {offsets = [5, 0], sizes = [1, 256], strides = [1, 1]} : vector<9x256xf32> to vector<1x256xf32>
    %65 = vector.shape_cast %64 : vector<1x256xf32> to vector<256xf32>
    %66 = vector.shape_cast %65 : vector<256xf32> to vector<1x256xf32>
    %67 = vector.broadcast %66 : vector<1x256xf32> to vector<2x256xf32>
    %68 = arith.mulf %63, %67 : vector<2x256xf32>
    %c196_i32 = arith.constant 196 : i32
    %69 = tpu.dynamic_rotate %38 by %c196_i32 dim 1 : vector<2x256xf32>, i32 -> vector<2x256xf32>
    %70 = vector.extract_strided_slice %2 {offsets = [6, 0], sizes = [1, 256], strides = [1, 1]} : vector<9x256xf32> to vector<1x256xf32>
    %71 = vector.shape_cast %70 : vector<1x256xf32> to vector<256xf32>
    %72 = vector.shape_cast %71 : vector<256xf32> to vector<1x256xf32>
    %73 = vector.broadcast %72 : vector<1x256xf32> to vector<2x256xf32>
    %74 = arith.mulf %69, %73 : vector<2x256xf32>
    %c192_i32 = arith.constant 192 : i32
    %75 = tpu.dynamic_rotate %38 by %c192_i32 dim 1 : vector<2x256xf32>, i32 -> vector<2x256xf32>
    %76 = vector.extract_strided_slice %2 {offsets = [7, 0], sizes = [1, 256], strides = [1, 1]} : vector<9x256xf32> to vector<1x256xf32>
    %77 = vector.shape_cast %76 : vector<1x256xf32> to vector<256xf32>
    %78 = vector.shape_cast %77 : vector<256xf32> to vector<1x256xf32>
    %79 = vector.broadcast %78 : vector<1x256xf32> to vector<2x256xf32>
    %80 = arith.mulf %75, %79 : vector<2x256xf32>
    %c188_i32 = arith.constant 188 : i32
    %81 = tpu.dynamic_rotate %38 by %c188_i32 dim 1 : vector<2x256xf32>, i32 -> vector<2x256xf32>
    %82 = vector.extract_strided_slice %2 {offsets = [8, 0], sizes = [1, 256], strides = [1, 1]} : vector<9x256xf32> to vector<1x256xf32>
    %83 = vector.shape_cast %82 : vector<1x256xf32> to vector<256xf32>
    %84 = vector.shape_cast %83 : vector<256xf32> to vector<1x256xf32>
    %85 = vector.broadcast %84 : vector<1x256xf32> to vector<2x256xf32>
    %86 = arith.mulf %81, %85 : vector<2x256xf32>
    %87 = tpu.concatenate %44, %50, %56, %62, %38, %68, %74, %80, %86 in 0 : vector<2x256xf32>, vector<2x256xf32>, vector<2x256xf32>, vector<2x256xf32>, vector<2x256xf32>, vector<2x256xf32>, vector<2x256xf32>, vector<2x256xf32>, vector<2x256xf32> -> vector<18x256xf32>
    %88 = arith.truncf %87 : vector<18x256xf32> to vector<18x256xbf16>
    %cst_11 = arith.constant dense<0.000000e+00> : vector<2x256xf32>
    %89 = tpu.matmul %14, %88, %cst_11 {dimension_numbers = #tpu.dot_dimension_numbers<[1], [0], [0], [1], [0, 0, 1, 1], [], []>} : vector<2x18xbf16>, vector<18x256xbf16>, vector<2x256xf32> -> vector<2x256xf32>
    %90 = vector.broadcast %15 : vector<2x1xf32> to vector<2x256xf32>
    %91 = arith.addf %89, %90 : vector<2x256xf32>
    %cst_12 = arith.constant 0.000000e+00 : f32
    %92 = vector.broadcast %cst_12 : f32 to vector<2x256xf32>
    %93 = arith.maximumf %91, %92 : vector<2x256xf32>
    %c68_i32_13 = arith.constant 68 : i32
    %94 = tpu.dynamic_rotate %93 by %c68_i32_13 dim 1 : vector<2x256xf32>, i32 -> vector<2x256xf32>
    %95 = vector.extract_strided_slice %2 {offsets = [0, 0], sizes = [1, 256], strides = [1, 1]} : vector<9x256xf32> to vector<1x256xf32>
    %96 = vector.shape_cast %95 : vector<1x256xf32> to vector<256xf32>
    %97 = vector.shape_cast %96 : vector<256xf32> to vector<1x256xf32>
    %98 = vector.broadcast %97 : vector<1x256xf32> to vector<2x256xf32>
    %99 = arith.mulf %94, %98 : vector<2x256xf32>
    %c64_i32_14 = arith.constant 64 : i32
    %100 = tpu.dynamic_rotate %93 by %c64_i32_14 dim 1 : vector<2x256xf32>, i32 -> vector<2x256xf32>
    %101 = vector.extract_strided_slice %2 {offsets = [1, 0], sizes = [1, 256], strides = [1, 1]} : vector<9x256xf32> to vector<1x256xf32>
    %102 = vector.shape_cast %101 : vector<1x256xf32> to vector<256xf32>
    %103 = vector.shape_cast %102 : vector<256xf32> to vector<1x256xf32>
    %104 = vector.broadcast %103 : vector<1x256xf32> to vector<2x256xf32>
    %105 = arith.mulf %100, %104 : vector<2x256xf32>
    %c60_i32_15 = arith.constant 60 : i32
    %106 = tpu.dynamic_rotate %93 by %c60_i32_15 dim 1 : vector<2x256xf32>, i32 -> vector<2x256xf32>
    %107 = vector.extract_strided_slice %2 {offsets = [2, 0], sizes = [1, 256], strides = [1, 1]} : vector<9x256xf32> to vector<1x256xf32>
    %108 = vector.shape_cast %107 : vector<1x256xf32> to vector<256xf32>
    %109 = vector.shape_cast %108 : vector<256xf32> to vector<1x256xf32>
    %110 = vector.broadcast %109 : vector<1x256xf32> to vector<2x256xf32>
    %111 = arith.mulf %106, %110 : vector<2x256xf32>
    %c4_i32_16 = arith.constant 4 : i32
    %112 = tpu.dynamic_rotate %93 by %c4_i32_16 dim 1 : vector<2x256xf32>, i32 -> vector<2x256xf32>
    %113 = vector.extract_strided_slice %2 {offsets = [3, 0], sizes = [1, 256], strides = [1, 1]} : vector<9x256xf32> to vector<1x256xf32>
    %114 = vector.shape_cast %113 : vector<1x256xf32> to vector<256xf32>
    %115 = vector.shape_cast %114 : vector<256xf32> to vector<1x256xf32>
    %116 = vector.broadcast %115 : vector<1x256xf32> to vector<2x256xf32>
    %117 = arith.mulf %112, %116 : vector<2x256xf32>
    %c252_i32_17 = arith.constant 252 : i32
    %118 = tpu.dynamic_rotate %93 by %c252_i32_17 dim 1 : vector<2x256xf32>, i32 -> vector<2x256xf32>
    %119 = vector.extract_strided_slice %2 {offsets = [5, 0], sizes = [1, 256], strides = [1, 1]} : vector<9x256xf32> to vector<1x256xf32>
    %120 = vector.shape_cast %119 : vector<1x256xf32> to vector<256xf32>
    %121 = vector.shape_cast %120 : vector<256xf32> to vector<1x256xf32>
    %122 = vector.broadcast %121 : vector<1x256xf32> to vector<2x256xf32>
    %123 = arith.mulf %118, %122 : vector<2x256xf32>
    %c196_i32_18 = arith.constant 196 : i32
    %124 = tpu.dynamic_rotate %93 by %c196_i32_18 dim 1 : vector<2x256xf32>, i32 -> vector<2x256xf32>
    %125 = vector.extract_strided_slice %2 {offsets = [6, 0], sizes = [1, 256], strides = [1, 1]} : vector<9x256xf32> to vector<1x256xf32>
    %126 = vector.shape_cast %125 : vector<1x256xf32> to vector<256xf32>
    %127 = vector.shape_cast %126 : vector<256xf32> to vector<1x256xf32>
    %128 = vector.broadcast %127 : vector<1x256xf32> to vector<2x256xf32>
    %129 = arith.mulf %124, %128 : vector<2x256xf32>
    %c192_i32_19 = arith.constant 192 : i32
    %130 = tpu.dynamic_rotate %93 by %c192_i32_19 dim 1 : vector<2x256xf32>, i32 -> vector<2x256xf32>
    %131 = vector.extract_strided_slice %2 {offsets = [7, 0], sizes = [1, 256], strides = [1, 1]} : vector<9x256xf32> to vector<1x256xf32>
    %132 = vector.shape_cast %131 : vector<1x256xf32> to vector<256xf32>
    %133 = vector.shape_cast %132 : vector<256xf32> to vector<1x256xf32>
    %134 = vector.broadcast %133 : vector<1x256xf32> to vector<2x256xf32>
    %135 = arith.mulf %130, %134 : vector<2x256xf32>
    %c188_i32_20 = arith.constant 188 : i32
    %136 = tpu.dynamic_rotate %93 by %c188_i32_20 dim 1 : vector<2x256xf32>, i32 -> vector<2x256xf32>
    %137 = vector.extract_strided_slice %2 {offsets = [8, 0], sizes = [1, 256], strides = [1, 1]} : vector<9x256xf32> to vector<1x256xf32>
    %138 = vector.shape_cast %137 : vector<1x256xf32> to vector<256xf32>
    %139 = vector.shape_cast %138 : vector<256xf32> to vector<1x256xf32>
    %140 = vector.broadcast %139 : vector<1x256xf32> to vector<2x256xf32>
    %141 = arith.mulf %136, %140 : vector<2x256xf32>
    %142 = tpu.concatenate %99, %105, %111, %117, %93, %123, %129, %135, %141 in 0 : vector<2x256xf32>, vector<2x256xf32>, vector<2x256xf32>, vector<2x256xf32>, vector<2x256xf32>, vector<2x256xf32>, vector<2x256xf32>, vector<2x256xf32>, vector<2x256xf32> -> vector<18x256xf32>
    %143 = arith.truncf %142 : vector<18x256xf32> to vector<18x256xbf16>
    %cst_21 = arith.constant dense<0.000000e+00> : vector<2x256xf32>
    %144 = tpu.matmul %17, %143, %cst_21 {dimension_numbers = #tpu.dot_dimension_numbers<[1], [0], [0], [1], [0, 0, 1, 1], [], []>} : vector<2x18xbf16>, vector<18x256xbf16>, vector<2x256xf32> -> vector<2x256xf32>
    %145 = vector.broadcast %18 : vector<2x1xf32> to vector<2x256xf32>
    %146 = arith.addf %144, %145 : vector<2x256xf32>
    %cst_22 = arith.constant 0.000000e+00 : f32
    %147 = vector.broadcast %cst_22 : f32 to vector<2x256xf32>
    %148 = arith.maximumf %146, %147 : vector<2x256xf32>
    %149 = arith.truncf %148 : vector<2x256xf32> to vector<2x256xbf16>
    %cst_23 = arith.constant dense<0.000000e+00> : vector<1x256xf32>
    %150 = tpu.matmul %20, %149, %cst_23 {dimension_numbers = #tpu.dot_dimension_numbers<[1], [0], [0], [1], [0, 0, 1, 1], [], []>} : vector<1x2xbf16>, vector<2x256xbf16>, vector<1x256xf32> -> vector<1x256xf32>
    %151 = vector.broadcast %21 : vector<1x1xf32> to vector<1x256xf32>
    %152 = arith.addf %150, %151 : vector<1x256xf32>
    %153 = vector.broadcast %33 : vector<32x1xf32> to vector<32x256xf32>
    %154 = vector.broadcast %152 : vector<1x256xf32> to vector<32x256xf32>
    %155 = arith.addf %153, %154 : vector<32x256xf32>
    %cst_24 = arith.constant 0.000000e+00 : f32
    %156 = vector.broadcast %cst_24 : f32 to vector<32x256xf32>
    %157 = arith.subf %156, %155 : vector<32x256xf32>
    %158 = math.exp %157 : vector<32x256xf32>
    %cst_25 = arith.constant 1.000000e+00 : f32
    %159 = vector.broadcast %cst_25 : f32 to vector<32x256xf32>
    %160 = arith.addf %159, %158 : vector<32x256xf32>
    %161 = tpu.reciprocal %160 {approx = true} : vector<32x256xf32> -> vector<32x256xf32>
    %162 = arith.mulf %161, %0 : vector<32x256xf32>
    %163 = arith.addf %162, %0 : vector<32x256xf32>
    %c0_26 = arith.constant 0 : index
    %c0_27 = arith.constant 0 : index
    %164 = vector.load %arg4[%c0_26, %c0_27] : memref<32x256xf32, #tpu.memory_space<vmem>>, vector<32x256xf32>
    tpu.vector_store %arg4[%c0_26, %c0_27], %163 {strides = array<i32>} : memref<32x256xf32, #tpu.memory_space<vmem>>, vector<32x256xf32>,
    return
  }
  func.func @transform_0(%arg0: i32) -> (i32, i32) {
    %c0_i32 = arith.constant 0 : i32
    %c0_i32_0 = arith.constant 0 : i32
    return %c0_i32, %arg0 : i32, i32
  }
  func.func @transform_1(%arg0: i32) -> (i32, i32) {
    %c0_i32 = arith.constant 0 : i32
    %c0_i32_0 = arith.constant 0 : i32
    %c0_i32_1 = arith.constant 0 : i32
    return %c0_i32, %c0_i32_0 : i32, i32
  }
  func.func @transform_2(%arg0: i32) -> (i32, i32) {
    %c0_i32 = arith.constant 0 : i32
    %c0_i32_0 = arith.constant 0 : i32
    %c0_i32_1 = arith.constant 0 : i32
    return %c0_i32, %c0_i32_0 : i32, i32
  }
  func.func @transform_3(%arg0: i32) -> (i32, i32) {
    %c0_i32 = arith.constant 0 : i32
    %c0_i32_0 = arith.constant 0 : i32
    return %c0_i32, %arg0 : i32, i32
  }
}

</mosaic_0001>

<llo_original>
// kernel: tpu_custom_call.1
$region0: #{tpu_custom_call.1}
  #allocation0 [shape = 'u32[]', space=smem, size = 0x4, offset = 0x4, fixed_abs, tag = 'smem constant byte address 0x4 - core index']
  #allocation1 [shape = 'u32[72,128]{1,0:T(1,128)}', space=vmem, size = 0x9000, scoped, tag = 'internal scratch']
  %s0 = inlined_call_operand.hbm [shape: f32[32,512], index: 0, kind: input, shape index: {}]
  %s1 = inlined_call_operand.hbm [shape: f32[9,256], index: 1, kind: input, shape index: {}]
  %s2 = inlined_call_operand.hbm [shape: f32[72,128], index: 2, kind: input, shape index: {}]
  %s3 = inlined_call_operand.hbm [shape: f32[32,512], index: 3, kind: output, shape index: {}]
  %s4 = sld [smem:[#allocation0]]
  $region57: #{tpu_custom_call.1} parent=0
    _
  %s6 = ssub.s32 1, %s4
  %s7 = scalar_select 0, %s6, %s4
  $region1: #{tpu_custom_call.1} parent=0
    #allocation2 [shape = 'u8[65536]{0}', space=vmem, size = 0x10000, scoped, tag = 'input window, operand 0']
    #allocation3 [shape = 's32[2]{0}', space=sflag, size = 0x8, scoped, tag = 'scoped memory for tpu_custom_call.1']
    #allocation4 [shape = 's32[2]{0}', space=sflag, size = 0x8, scoped, tag = 'scoped memory for tpu_custom_call.1']
    #allocation5 [shape = 'u8[16384]{0}', space=vmem, size = 0x4000, scoped, tag = 'input window, operand 1, single buffered']
    #allocation6 [shape = 's32[1]{0}', space=sflag, size = 0x4, scoped, tag = 'scoped memory for tpu_custom_call.1']
    #allocation7 [shape = 'u8[36864]{0}', space=vmem, size = 0x9000, scoped, tag = 'input window, operand 2, single buffered']
    #allocation8 [shape = 'u8[65536]{0}', space=vmem, size = 0x10000, scoped, tag = 'output window, operand 0']
    %8 = vsyncpa [#allocation3], 0
    %s9 = scalar_lea.sflag [#allocation3], 1
    %10 = vsyncpa %s9, 0
    %11 = vsyncpa [#allocation6], 0
    %12 = vsyncpa [#allocation4], 0
    %s13 = scalar_lea.sflag [#allocation4], 1
    %14 = vsyncpa %s13, 0
    loop: start=0, step=1, limit=4
    $region2: #{tpu_custom_call.1} parent=1 // loop_pre_header
      _
    $region3: #{tpu_custom_call.1} parent=1 // loop_header
      %s16 = sphi 0, %s20
      %p17 = scmp.ge.s32.totalorder %s16, 4
      %s26 = sphi 0, %s28
      %s29 = sphi 0, %s26
      %s30 = sphi 0, %s29
      %s46 = sphi 0, %s30
      %s50 = sphi 0, %s50
      %s52 = sphi 0, %s50
      %s53 = sphi 0, %s52
      %s67 = sphi 0, %s53
      %s71 = sphi 0, %s71
      %s73 = sphi 0, %s71
      %s74 = sphi 0, %s73
      %s88 = sphi 0, %s74
      %s94 = sphi 0, %s96
      %s97 = sphi 0, %s94
      %s98 = sphi 0, %s97
      %s114 = sphi 0, %s98
    $region4: #{tpu_custom_call.1} parent=1 // loop_header_branch
      %19 = sbr.rel (%p17) target = $region8
    $region5: #{tpu_custom_call.1} parent=1 // loop_body
      %s21 = ssub.s32 %s16, 1
      %s22 = ssub.s32 %s16, 2
      %s23 = sadd.s32 %s16, 1
      %s24 = ssub.s32 %s16, %s23
      %p25 = scmp.eq.s32.totalorder %s24, 0
      %s27 = sadd.s32 %s26, 1
      %s28 = scalar_select %p25, %s26, %s27
      %p31 = pneg %p25
      %p32 = scmp.eq.s32.totalorder %s16, 1
      %p33 = por %p31, %p32
      %p34 = scmp.ne.s32.totalorder %s26, %s29
      %p35 = scmp.eq.s32.totalorder %s16, 0
      %p36 = por %p34, %p35
      %p37 = scmp.ne.s32.totalorder %s26, %s29
      %p38 = scmp.eq.s32.totalorder %s21, 1
      %p39 = por %p37, %p38
      %p40 = scmp.ne.s32.totalorder %s29, %s30
      %p41 = scmp.eq.s32.totalorder %s21, 0
      %p42 = por %p40, %p41
      %p43 = scmp.ne.s32.totalorder %s29, %s30
      %p44 = scmp.eq.s32.totalorder %s22, 1
      %p45 = por %p43, %p44
      %p47 = scmp.ne.s32.totalorder %s30, %s46
      %p48 = scmp.eq.s32.totalorder %s22, 0
      %p49 = por %p47, %p48
      %s51 = sadd.s32 %s50, 1
      %p54 = scmp.eq.s32.totalorder %s16, 1
      %p55 = scmp.ne.s32.totalorder %s50, %s52
      %p56 = scmp.eq.s32.totalorder %s16, 0
      %p57 = por %p55, %p56
      %p58 = scmp.ne.s32.totalorder %s50, %s52
      %p59 = scmp.eq.s32.totalorder %s21, 1
      %p60 = por %p58, %p59
      %p61 = scmp.ne.s32.totalorder %s52, %s53
      %p62 = scmp.eq.s32.totalorder %s21, 0
      %p63 = por %p61, %p62
      %p64 = scmp.ne.s32.totalorder %s52, %s53
      %p65 = scmp.eq.s32.totalorder %s22, 1
      %p66 = por %p64, %p65
      %p68 = scmp.ne.s32.totalorder %s53, %s67
      %p69 = scmp.eq.s32.totalorder %s22, 0
      %p70 = por %p68, %p69
      %s72 = sadd.s32 %s71, 1
      %p75 = scmp.eq.s32.totalorder %s16, 1
      %p76 = scmp.ne.s32.totalorder %s71, %s73
      %p77 = scmp.eq.s32.totalorder %s16, 0
      %p78 = por %p76, %p77
      %p79 = scmp.ne.s32.totalorder %s71, %s73
      %p80 = scmp.eq.s32.totalorder %s21, 1
      %p81 = por %p79, %p80
      %p82 = scmp.ne.s32.totalorder %s73, %s74
      %p83 = scmp.eq.s32.totalorder %s21, 0
      %p84 = por %p82, %p83
      %p85 = scmp.ne.s32.totalorder %s73, %s74
      %p86 = scmp.eq.s32.totalorder %s22, 1
      %p87 = por %p85, %p86
      %p89 = scmp.ne.s32.totalorder %s74, %s88
      %p90 = scmp.eq.s32.totalorder %s22, 0
      %p91 = por %p89, %p90
      %s92 = ssub.s32 %s16, %s23
      %p93 = scmp.eq.s32.totalorder %s92, 0
      %s95 = sadd.s32 %s94, 1
      %s96 = scalar_select %p93, %s94, %s95
      %p99 = pneg %p93
      %p100 = scmp.eq.s32.totalorder %s16, 1
      %p101 = por %p99, %p100
      %p102 = scmp.ne.s32.totalorder %s94, %s97
      %p103 = scmp.eq.s32.totalorder %s16, 0
      %p104 = por %p102, %p103
      %p105 = scmp.ne.s32.totalorder %s94, %s97
      %p106 = scmp.eq.s32.totalorder %s21, 1
      %p107 = por %p105, %p106
      %p108 = scmp.ne.s32.totalorder %s97, %s98
      %p109 = scmp.eq.s32.totalorder %s21, 0
      %p110 = por %p108, %p109
      %p111 = scmp.ne.s32.totalorder %s97, %s98
      %p112 = scmp.eq.s32.totalorder %s22, 1
      %p113 = por %p111, %p112
      %p115 = scmp.ne.s32.totalorder %s98, %s114
      %p116 = scmp.eq.s32.totalorder %s22, 0
      %p117 = por %p115, %p116
      %p118 = scmp.le.s32.totalorder 1, %s16
      %p119 = scmp.lt.s32.totalorder %s16, 3
      %p120 = pnand %p118, %p119
      %p121 = pneg %p120
      // Predicated region
      $region9: #{tpu_custom_call.1} parent=5 // pred_check
        _
      $region10: #{tpu_custom_call.1} parent=5 // pred_check_branch
        %123 = sbr.rel (%p120) target = $region12
      $region11: #{tpu_custom_call.1} parent=5 // pred_region
        %s124 = ssub.s32 %s16, 1
        // Predicated region
        $region13: #{tpu_custom_call.1} parent=11 // pred_check
          %p125 = pneg %p63
        $region14: #{tpu_custom_call.1} parent=11 // pred_check_branch
          %127 = sbr.rel (%p125) target = $region16
        $region15: #{tpu_custom_call.1} parent=11 // pred_region
          %129 = vsyncadd [#allocation6], 0
          %s130 = sshll.u32 %s1, 4
          %s131 = int_to_ptr.hbm [resolvable:$true] %s130
          %s132 = sshll.u32 [#allocation5], 4
          %s133 = int_to_ptr.vmem [resolvable:$true] %s132
          %138 = dma.hbm_to_vmem [thread:$0]  %s131, 512, %s133, [#allocation6], 256, 256, 16
        $region16: #{tpu_custom_call.1} parent=11 // pred_fallthru
          _
        // Predicated region
        $region17: #{tpu_custom_call.1} parent=11 // pred_check
          %p139 = pneg %p84
        $region18: #{tpu_custom_call.1} parent=11 // pred_check_branch
          %141 = sbr.rel (%p139) target = $region20
        $region19: #{tpu_custom_call.1} parent=11 // pred_region
          %143 = vsyncadd [#allocation6], 0
          %s144 = sshll.u32 %s2, 4
          %s145 = int_to_ptr.hbm [resolvable:$true] %s144
          %s146 = sshll.u32 [#allocation7], 4
          %s147 = int_to_ptr.vmem [resolvable:$true] %s146
          %152 = dma.hbm_to_vmem [thread:$0]  %s145, 1152, %s147, [#allocation6], 128, 128, 8
        $region20: #{tpu_custom_call.1} parent=11 // pred_fallthru
          _
      $region12: #{tpu_custom_call.1} parent=5 // pred_fallthru
        _
      %p153 = scmp.lt.s32.totalorder %s16, 2
      // Predicated region
      $region21: #{tpu_custom_call.1} parent=5 // pred_check
        %p154 = pneg %p153
      $region22: #{tpu_custom_call.1} parent=5 // pred_check_branch
        %156 = sbr.rel (%p154) target = $region24
      $region23: #{tpu_custom_call.1} parent=5 // pred_region
        // Predicated region
        $region25: #{tpu_custom_call.1} parent=23 // pred_check
          %p157 = pneg %p36
        $region26: #{tpu_custom_call.1} parent=23 // pred_check_branch
          %159 = sbr.rel (%p157) target = $region28
        $region27: #{tpu_custom_call.1} parent=23 // pred_region
          %s160 = sand.u32 %s26, 1
          %s161 = scalar_lea.sflag [#allocation3], %s160
          %s162 = sand.u32 %s26, 1
          %s163 = smul.addr %s162, 64
          %s164 = scalar_lea.vmem [#allocation2], %s163
          %s165 = smul.u32 2, %s16
          %167 = vsyncadd %s161, 0
          %s168 = smul.addr %s165, 8
          %s169 = scalar_lea.hbm %s0, %s168
          %s170 = sshll.u32 %s169, 4
          %s171 = int_to_ptr.hbm [resolvable:$true] %s170
          %s172 = sshll.u32 %s164, 4
          %s173 = int_to_ptr.vmem [resolvable:$true] %s172
          %178 = dma.hbm_to_vmem [thread:$0]  %s171, 1024, %s173, %s161, 512, 256, 16
        $region28: #{tpu_custom_call.1} parent=23 // pred_fallthru
          _
      $region24: #{tpu_custom_call.1} parent=5 // pred_fallthru
        _
      %p179 = scmp.le.s32.totalorder 1, %s16
      %p180 = scmp.lt.s32.totalorder %s16, 3
      %p181 = pnand %p179, %p180
      %p182 = pneg %p181
      // Predicated region
      $region29: #{tpu_custom_call.1} parent=5 // pred_check
        _
      $region30: #{tpu_custom_call.1} parent=5 // pred_check_branch
        %184 = sbr.rel (%p181) target = $region32
      $region31: #{tpu_custom_call.1} parent=5 // pred_region
        %s185 = ssub.s32 %s16, 1
        %s186 = sand.u32 %s29, 1
        %s187 = scalar_lea.sflag [#allocation3], %s186
        %s188 = sand.u32 %s29, 1
        %s189 = smul.addr %s188, 64
        %s190 = scalar_lea.vmem [#allocation2], %s189
        // Predicated region
        $region33: #{tpu_custom_call.1} parent=31 // pred_check
          %p191 = pneg %p42
        $region34: #{tpu_custom_call.1} parent=31 // pred_check_branch
          %193 = sbr.rel (%p191) target = $region36
        $region35: #{tpu_custom_call.1} parent=31 // pred_region
          %195 = dma.done %s187, 1024
        $region36: #{tpu_custom_call.1} parent=31 // pred_fallthru
          _
        // Predicated region
        $region37: #{tpu_custom_call.1} parent=31 // pred_check
          %p196 = pneg %p63
        $region38: #{tpu_custom_call.1} parent=31 // pred_check_branch
          %198 = sbr.rel (%p196) target = $region40
        $region39: #{tpu_custom_call.1} parent=31 // pred_region
          %200 = dma.done [#allocation6], 512
        $region40: #{tpu_custom_call.1} parent=31 // pred_fallthru
          _
        // Predicated region
        $region41: #{tpu_custom_call.1} parent=31 // pred_check
          %p201 = pneg %p84
        $region42: #{tpu_custom_call.1} parent=31 // pred_check_branch
          %203 = sbr.rel (%p201) target = $region44
        $region43: #{tpu_custom_call.1} parent=31 // pred_region
          %205 = dma.done [#allocation6], 1152
        $region44: #{tpu_custom_call.1} parent=31 // pred_fallthru
          _
        %s206 = sand.u32 %s29, 1
        %s207 = scalar_lea.sflag [#allocation3], %s206
        %s208 = sand.u32 %s29, 1
        %s209 = smul.addr %s208, 64
        %s210 = scalar_lea.vmem [#allocation2], %s209
        %p211 = pneg %p42
        %p212 = pneg %p39
        %p213 = pneg %p63
        %p214 = pneg %p60
        %p215 = pneg %p84
        %p216 = pneg %p81
        %p217 = pneg %p110
        %p218 = pneg %p107
        %s219 = sand.u32 %s97, 1
        %s220 = scalar_lea.sflag [#allocation4], %s219
        %s221 = sand.u32 %s97, 1
        %s222 = smul.addr %s221, 64
        %s223 = scalar_lea.vmem [#allocation8], %s222
        %s224 = smul.u32 2, %s21
        %s225 = smul.u32 2, %s21
        %v227 = vld [vmem:[%s190] sm:$0xff]
        %v228 = vld [vmem:[%s190 + $0x8] sm:$0xff]
        %v229 = vld [vmem:[%s190 + $0x10] sm:$0xff]
        %v230 = vld [vmem:[%s190 + $0x18] sm:$0xff]
        %v231 = vld [vmem:[%s190 + $0x20] sm:$0xff]
        %v232 = vld [vmem:[%s190 + $0x28] sm:$0xff]
        %v233 = vld [vmem:[%s190 + $0x30] sm:$0xff]
        %v234 = vld [vmem:[%s190 + $0x38] sm:$0xff]
        %v235 = vpack.c.bf16 %v229, %v227
        %v236 = vpack.c.bf16 %v230, %v228
        %v237 = vpack.c.bf16 %v233, %v231
        %v238 = vpack.c.bf16 %v234, %v232
        %v239 = vld [vmem:[#allocation5] sm:$0xff]
        %v240 = vld [vmem:[#allocation5 + $0x8] sm:$0xff]
        %v241 = vld [vmem:[#allocation5 + $0x10] sm:$0x1]
        %v242 = vld [vmem:[#allocation5 + $0x18] sm:$0x1]
        %v243 = vld [vmem:[#allocation7] sm:$0xff]
        %v244 = vld [vmem:[#allocation7 + $0x8] sm:$0xff]
        %v245 = vld [vmem:[#allocation7 + $0x10] sm:$0xff]
        %v246 = vld [vmem:[#allocation7 + $0x18] sm:$0xff]
        %v247 = vld [vmem:[#allocation7 + $0x20] sm:$0xff]
        %v248 = vld [vmem:[#allocation7 + $0x28] sm:$0xff]
        %v249 = vld [vmem:[#allocation7 + $0x30] sm:$0xff]
        %v250 = vld [vmem:[#allocation7 + $0x38] sm:$0xff]
        %v251 = vld [vmem:[#allocation7 + $0x40] sm:$0xff]
        %v252 = vpack.c.bf16 %v243, %v243
        %v253 = vpack.c.bf16 %v245, %v244
        %v254 = vpack.c.bf16 %v247, %v246
        %v255 = vpack.c.bf16 %v248, %v248
        %v256 = vpack.c.bf16 %v249, %v249
        %v257 = vpack.c.bf16 %v250, %v250
        %v258 = vpack.c.bf16 %v251, %v251
        %v259 = vadd.f32 %v227, %v228
        %260 = vadd.xlane.f32.xlu0 %v259
        %v261 = vpop.xlane.xlu0 %260
        %v262 = vadd.f32 %v229, %v230
        %263 = vadd.xlane.f32.xlu0 %v262
        %v264 = vpop.xlane.xlu0 %263
        %v265 = vadd.f32 %v231, %v232
        %266 = vadd.xlane.f32.xlu0 %v265
        %v267 = vpop.xlane.xlu0 %266
        %v268 = vadd.f32 %v233, %v234
        %269 = vadd.xlane.f32.xlu0 %v268
        %v270 = vpop.xlane.xlu0 %269
        %v271 = vmul.f32 %v261, 0.00390625
        %v272 = vmul.f32 %v264, 0.00390625
        %v273 = vmul.f32 %v267, 0.00390625
        %v274 = vmul.f32 %v270, 0.00390625
        %v275 = vpack.c.bf16 %v272, %v271
        %v276 = vpack.c.bf16 %v274, %v273
        %278 = vrot.lane.b32.xlu0 %v243, 96
        %v279 = vpop.permute.xlu0 %278
        %vm281 = vcmask 261120
        %v283 = vsel %vm281, %v252, 0
        %285 = vmatpush.bf16.msra.mxu0 0
        %286 = vmatpush.bf16.msra.mxu0 0
        %287 = vmatpush.bf16.msra.mxu0 0
        %288 = vmatpush.bf16.msra.mxu0 0
        %289 = vmatpush.bf16.msra.mxu0 0
        %290 = vmatpush.bf16.msra.mxu0 0
        %291 = vmatpush.bf16.msra.mxu0 %v276
        %292 = vmatpush.bf16.msra.mxu0 %v275
        %293 = vmatmul.bf16.gmra.mxu0 %v283
        %v294 = vpop.f32.mrf.mxu0
        %v295 = vadd.f32 %v279, %v294
        %v296 = vpop.f32.mrf.mxu0
        %297 = vdwg.mxu0
        %v298 = vmax.f32 %v295, 0.0
        %v299 = vpack.c.bf16 %v298, %v298
        %304 = vrot.lane.b32.xlu0 %v244, 126
        %v305 = vpop.permute.xlu0 %304
        %306 = vrot.lane.b32.xlu0 %v245, 126
        %v307 = vpop.permute.xlu0 %306
        %308 = vrot.lane.b32.xlu0 %v246, 126
        %v309 = vpop.permute.xlu0 %308
        %310 = vrot.lane.b32.xlu0 %v247, 126
        %v311 = vpop.permute.xlu0 %310
        %vm316 = vcmask 15360
        %v318 = vsel %vm316, %v253, 0
        %v321 = vsel %vm316, %v254, 0
        %vm323 = vcmask 1040384
        %v325 = vsel %vm323, %v299, 0
        %327 = vmatpush.bf16.msra.mxu0 0
        %328 = vmatpush.bf16.msra.mxu0 0
        %329 = vmatpush.bf16.msra.mxu0 0
        %330 = vmatpush.bf16.msra.mxu0 0
        %331 = vmatpush.bf16.msra.mxu0 0
        %332 = vmatpush.bf16.msra.mxu0 0
        %333 = vmatpush.bf16.msra.mxu0 0
        %334 = vmatpush.bf16.msra.mxu0 %v325
        %335 = vmatmul.bf16.gmra.mxu0 %v318
        %v336 = vpop.f32.mrf.mxu0
        %v337 = vadd.f32 %v305, %v336
        %v338 = vpop.f32.mrf.mxu0
        %v339 = vadd.f32 %v307, %v338
        %340 = vmatmul.bf16.gmra.mxu0 %v321
        %v341 = vpop.f32.mrf.mxu0
        %v342 = vadd.f32 %v309, %v341
        %v343 = vpop.f32.mrf.mxu0
        %v344 = vadd.f32 %v311, %v343
        %345 = vdwg.mxu0
        %347 = vset.pattern.permute.xlu0 32
        %348 = vperm.xlu0 %347, %v248
        %v349 = vpop.permute.xlu0 %348
        %v352 = vsel %vm281, %v255, 0
        %354 = vmatpush.bf16.msra.mxu0 0
        %355 = vmatpush.bf16.msra.mxu0 0
        %356 = vmatpush.bf16.msra.mxu0 0
        %357 = vmatpush.bf16.msra.mxu0 0
        %358 = vmatpush.bf16.msra.mxu0 0
        %359 = vmatpush.bf16.msra.mxu0 0
        %360 = vmatpush.bf16.msra.mxu0 %v237
        %361 = vmatpush.bf16.msra.mxu0 %v235
        %362 = vmatmul.bf16.gmra.mxu0 %v352
        %v363 = vpop.f32.mrf.mxu0
        %v364 = vadd.f32 %v349, %v363
        %v365 = vpop.f32.mrf.mxu0
        %366 = vdwg.mxu0
        %367 = vmatpush.bf16.msra.mxu0 0
        %368 = vmatpush.bf16.msra.mxu0 0
        %369 = vmatpush.bf16.msra.mxu0 0
        %370 = vmatpush.bf16.msra.mxu0 0
        %371 = vmatpush.bf16.msra.mxu0 0
        %372 = vmatpush.bf16.msra.mxu0 0
        %373 = vmatpush.bf16.msra.mxu0 %v238
        %374 = vmatpush.bf16.msra.mxu0 %v236
        %375 = vmatmul.bf16.gmra.mxu0 %v352
        %v376 = vpop.f32.mrf.mxu0
        %v377 = vadd.f32 %v349, %v376
        %v378 = vpop.f32.mrf.mxu0
        %379 = vdwg.mxu0
        %v380 = vmax.f32 %v364, 0.0
        %v381 = vmax.f32 %v377, 0.0
        %382 = vrot.lane.b32.xlu0 %v380, 68
        %v383 = vpop.permute.xlu0 %382
        %384 = vrot.lane.b32.xlu0 %v381, 68
        %v385 = vpop.permute.xlu0 %384
        %v386 = vlaneseq
        %v387 = vand.u32 %v386, 127
        %vm388 = vcmp.lt.s32.totalorder %v387, 68
        %v389 = vsel %vm388, %v383, %v385
        %v390 = vsel %vm388, %v385, %v383
        %v391 = vperm.slane %v239, 0
        %v392 = vperm.slane %v240, 0
        %v393 = vmul.f32 %v390, %v391
        %v394 = vmul.f32 %v389, %v392
        %395 = vrot.lane.b32.xlu0 %v380, 64
        %v396 = vpop.permute.xlu0 %395
        %397 = vrot.lane.b32.xlu0 %v381, 64
        %v398 = vpop.permute.xlu0 %397
        %vm399 = vcmp.lt.s32.totalorder %v387, 64
        %v400 = vsel %vm399, %v396, %v398
        %v401 = vsel %vm399, %v398, %v396
        %v402 = vperm.slane %v239, 1
        %v403 = vperm.slane %v240, 1
        %v404 = vmul.f32 %v401, %v402
        %v405 = vmul.f32 %v400, %v403
        %406 = vrot.lane.b32.xlu0 %v380, 60
        %v407 = vpop.permute.xlu0 %406
        %408 = vrot.lane.b32.xlu0 %v381, 60
        %v409 = vpop.permute.xlu0 %408
        %vm410 = vcmp.lt.s32.totalorder %v387, 60
        %v411 = vsel %vm410, %v407, %v409
        %v412 = vsel %vm410, %v409, %v407
        %v413 = vperm.slane %v239, 2
        %v414 = vperm.slane %v240, 2
        %v415 = vmul.f32 %v412, %v413
        %v416 = vmul.f32 %v411, %v414
        %417 = vrot.lane.b32.xlu0 %v380, 4
        %v418 = vpop.permute.xlu0 %417
        %419 = vrot.lane.b32.xlu0 %v381, 4
        %v420 = vpop.permute.xlu0 %419
        %vm421 = vcmp.lt.s32.totalorder %v387, 4
        %v422 = vsel %vm421, %v418, %v420
        %v423 = vsel %vm421, %v420, %v418
        %v424 = vperm.slane %v239, 3
        %v425 = vperm.slane %v240, 3
        %v426 = vmul.f32 %v423, %v424
        %v427 = vmul.f32 %v422, %v425
        %428 = vrot.lane.b32.xlu0 %v380, 124
        %v429 = vpop.permute.xlu0 %428
        %430 = vrot.lane.b32.xlu0 %v381, 124
        %v431 = vpop.permute.xlu0 %430
        %vm432 = vcmp.lt.s32.totalorder %v387, 124
        %v433 = vsel %vm432, %v429, %v431
        %v434 = vsel %vm432, %v431, %v429
        %v435 = vperm.slane %v239, 5
        %v436 = vperm.slane %v240, 5
        %v437 = vmul.f32 %v433, %v435
        %v438 = vmul.f32 %v434, %v436
        %v439 = vperm.slane %v239, 6
        %v440 = vperm.slane %v240, 6
        %v441 = vmul.f32 %v389, %v439
        %v442 = vmul.f32 %v390, %v440
        %v443 = vperm.slane %v239, 7
        %v444 = vperm.slane %v240, 7
        %v445 = vmul.f32 %v400, %v443
        %v446 = vmul.f32 %v401, %v444
        %v447 = vperm.slane %v241, 0
        %v448 = vperm.slane %v242, 0
        %v449 = vmul.f32 %v411, %v447
        %v450 = vmul.f32 %v412, %v448
        %v453 = vrot.slane %v404, 6
        %v454 = vrot.slane %v405, 6
        %v459 = vrot.slane %v415, 4
        %v460 = vrot.slane %v416, 4
        %v465 = vrot.slane %v426, 2
        %v466 = vrot.slane %v427, 2
        %v471 = vrot.slane %v437, 6
        %v472 = vrot.slane %v438, 6
        %v477 = vrot.slane %v441, 4
        %v478 = vrot.slane %v442, 4
        %v483 = vrot.slane %v445, 2
        %v484 = vrot.slane %v446, 2
        %vm487 = vcmask 1041408
        %v488 = vsel %vm487, %v393, %v453
        %v489 = vsel %vm487, %v394, %v454
        %vm490 = vcmask 1043456
        %v491 = vsel %vm490, %v488, %v459
        %v492 = vsel %vm490, %v489, %v460
        %vm493 = vcmask 1045504
        %v494 = vsel %vm493, %v491, %v465
        %v495 = vsel %vm493, %v492, %v466
        %v496 = vsel %vm487, %v380, %v471
        %v497 = vsel %vm487, %v381, %v472
        %v498 = vsel %vm490, %v496, %v477
        %v499 = vsel %vm490, %v497, %v478
        %v500 = vsel %vm493, %v498, %v483
        %v501 = vsel %vm493, %v499, %v484
        %v502 = vpack.c.bf16 %v500, %v494
        %v503 = vpack.c.bf16 %v501, %v495
        %v504 = vpack.c.bf16 %v449, %v449
        %v505 = vpack.c.bf16 %v450, %v450
        %507 = vset.pattern.permute.xlu0 18
        %508 = vperm.xlu0 %507, %v249
        %v509 = vpop.permute.xlu0 %508
        %vm511 = vcmask 146432
        %v513 = vsel %vm511, %v256, 0
        %v516 = vsel %vm323, %v504, 0
        %v519 = vsel %vm323, %v505, 0
        %521 = vmatpush.bf16.msra.mxu0 0
        %522 = vmatpush.bf16.msra.mxu0 0
        %523 = vmatpush.bf16.msra.mxu0 0
        %524 = vmatpush.bf16.msra.mxu0 0
        %525 = vmatpush.bf16.msra.mxu0 0
        %526 = vmatpush.bf16.msra.mxu0 0
        %527 = vmatpush.bf16.msra.mxu0 %v516
        %528 = vmatpush.bf16.msra.mxu0 %v502
        %529 = vmatmul.bf16.gmra.mxu0 %v513
        %v530 = vpop.f32.mrf.mxu0
        %v531 = vadd.f32 %v509, %v530
        %v532 = vpop.f32.mrf.mxu0
        %533 = vdwg.mxu0
        %534 = vmatpush.bf16.msra.mxu0 0
        %535 = vmatpush.bf16.msra.mxu0 0
        %536 = vmatpush.bf16.msra.mxu0 0
        %537 = vmatpush.bf16.msra.mxu0 0
        %538 = vmatpush.bf16.msra.mxu0 0
        %539 = vmatpush.bf16.msra.mxu0 0
        %540 = vmatpush.bf16.msra.mxu0 %v519
        %541 = vmatpush.bf16.msra.mxu0 %v503
        %542 = vmatmul.bf16.gmra.mxu0 %v513
        %v543 = vpop.f32.mrf.mxu0
        %v544 = vadd.f32 %v509, %v543
        %v545 = vpop.f32.mrf.mxu0
        %546 = vdwg.mxu0
        %v547 = vmax.f32 %v531, 0.0
        %v548 = vmax.f32 %v544, 0.0
        %549 = vrot.lane.b32.xlu0 %v547, 68
        %v550 = vpop.permute.xlu0 %549
        %551 = vrot.lane.b32.xlu0 %v548, 68
        %v552 = vpop.permute.xlu0 %551
        %v553 = vsel %vm388, %v550, %v552
        %v554 = vsel %vm388, %v552, %v550
        %v555 = vmul.f32 %v554, %v391
        %v556 = vmul.f32 %v553, %v392
        %557 = vrot.lane.b32.xlu0 %v547, 64
        %v558 = vpop.permute.xlu0 %557
        %559 = vrot.lane.b32.xlu0 %v548, 64
        %v560 = vpop.permute.xlu0 %559
        %v561 = vsel %vm399, %v558, %v560
        %v562 = vsel %vm399, %v560, %v558
        %v563 = vmul.f32 %v562, %v402
        %v564 = vmul.f32 %v561, %v403
        %565 = vrot.lane.b32.xlu0 %v547, 60
        %v566 = vpop.permute.xlu0 %565
        %567 = vrot.lane.b32.xlu0 %v548, 60
        %v568 = vpop.permute.xlu0 %567
        %v569 = vsel %vm410, %v566, %v568
        %v570 = vsel %vm410, %v568, %v566
        %v571 = vmul.f32 %v570, %v413
        %v572 = vmul.f32 %v569, %v414
        %573 = vrot.lane.b32.xlu0 %v547, 4
        %v574 = vpop.permute.xlu0 %573
        %575 = vrot.lane.b32.xlu0 %v548, 4
        %v576 = vpop.permute.xlu0 %575
        %v577 = vsel %vm421, %v574, %v576
        %v578 = vsel %vm421, %v576, %v574
        %v579 = vmul.f32 %v578, %v424
        %v580 = vmul.f32 %v577, %v425
        %581 = vrot.lane.b32.xlu0 %v547, 124
        %v582 = vpop.permute.xlu0 %581
        %583 = vrot.lane.b32.xlu0 %v548, 124
        %v584 = vpop.permute.xlu0 %583
        %v585 = vsel %vm432, %v582, %v584
        %v586 = vsel %vm432, %v584, %v582
        %v587 = vmul.f32 %v585, %v435
        %v588 = vmul.f32 %v586, %v436
        %v589 = vmul.f32 %v553, %v439
        %v590 = vmul.f32 %v554, %v440
        %v591 = vmul.f32 %v561, %v443
        %v592 = vmul.f32 %v562, %v444
        %v593 = vmul.f32 %v569, %v447
        %v594 = vmul.f32 %v570, %v448
        %v597 = vrot.slane %v563, 6
        %v598 = vrot.slane %v564, 6
        %v603 = vrot.slane %v571, 4
        %v604 = vrot.slane %v572, 4
        %v609 = vrot.slane %v579, 2
        %v610 = vrot.slane %v580, 2
        %v615 = vrot.slane %v587, 6
        %v616 = vrot.slane %v588, 6
        %v621 = vrot.slane %v589, 4
        %v622 = vrot.slane %v590, 4
        %v627 = vrot.slane %v591, 2
        %v628 = vrot.slane %v592, 2
        %v631 = vsel %vm487, %v555, %v597
        %v632 = vsel %vm487, %v556, %v598
        %v633 = vsel %vm490, %v631, %v603
        %v634 = vsel %vm490, %v632, %v604
        %v635 = vsel %vm493, %v633, %v609
        %v636 = vsel %vm493, %v634, %v610
        %v637 = vsel %vm487, %v547, %v615
        %v638 = vsel %vm487, %v548, %v616
        %v639 = vsel %vm490, %v637, %v621
        %v640 = vsel %vm490, %v638, %v622
        %v641 = vsel %vm493, %v639, %v627
        %v642 = vsel %vm493, %v640, %v628
        %v643 = vpack.c.bf16 %v641, %v635
        %v644 = vpack.c.bf16 %v642, %v636
        %v645 = vpack.c.bf16 %v593, %v593
        %v646 = vpack.c.bf16 %v594, %v594
        %648 = vset.pattern.permute.xlu0 18
        %649 = vperm.xlu0 %648, %v250
        %v650 = vpop.permute.xlu0 %649
        %v653 = vsel %vm511, %v257, 0
        %v656 = vsel %vm323, %v645, 0
        %v659 = vsel %vm323, %v646, 0
        %661 = vmatpush.bf16.msra.mxu0 0
        %662 = vmatpush.bf16.msra.mxu0 0
        %663 = vmatpush.bf16.msra.mxu0 0
        %664 = vmatpush.bf16.msra.mxu0 0
        %665 = vmatpush.bf16.msra.mxu0 0
        %666 = vmatpush.bf16.msra.mxu0 0
        %667 = vmatpush.bf16.msra.mxu0 %v656
        %668 = vmatpush.bf16.msra.mxu0 %v643
        %669 = vmatmul.bf16.gmra.mxu0 %v653
        %v670 = vpop.f32.mrf.mxu0
        %v671 = vadd.f32 %v650, %v670
        %v672 = vpop.f32.mrf.mxu0
        %673 = vdwg.mxu0
        %674 = vmatpush.bf16.msra.mxu0 0
        %675 = vmatpush.bf16.msra.mxu0 0
        %676 = vmatpush.bf16.msra.mxu0 0
        %677 = vmatpush.bf16.msra.mxu0 0
        %678 = vmatpush.bf16.msra.mxu0 0
        %679 = vmatpush.bf16.msra.mxu0 0
        %680 = vmatpush.bf16.msra.mxu0 %v659
        %681 = vmatpush.bf16.msra.mxu0 %v644
        %682 = vmatmul.bf16.gmra.mxu0 %v653
        %v683 = vpop.f32.mrf.mxu0
        %v684 = vadd.f32 %v650, %v683
        %v685 = vpop.f32.mrf.mxu0
        %686 = vdwg.mxu0
        %v687 = vmax.f32 %v671, 0.0
        %v688 = vmax.f32 %v684, 0.0
        %v689 = vpack.c.bf16 %v687, %v687
        %v690 = vpack.c.bf16 %v688, %v688
        %692 = vset.pattern.permute.xlu0 2
        %693 = vperm.xlu0 %692, %v251
        %v694 = vpop.permute.xlu0 %693
        %v697 = vsel %vm316, %v258, 0
        %v700 = vsel %vm323, %v689, 0
        %v703 = vsel %vm323, %v690, 0
        %705 = vmatpush.bf16.msra.mxu0 0
        %706 = vmatpush.bf16.msra.mxu0 0
        %707 = vmatpush.bf16.msra.mxu0 0
        %708 = vmatpush.bf16.msra.mxu0 0
        %709 = vmatpush.bf16.msra.mxu0 0
        %710 = vmatpush.bf16.msra.mxu0 0
        %711 = vmatpush.bf16.msra.mxu0 0
        %712 = vmatpush.bf16.msra.mxu0 %v700
        %713 = vmatmul.bf16.gmra.mxu0 %v697
        %v714 = vpop.f32.mrf.mxu0
        %v715 = vadd.f32 %v694, %v714
        %v716 = vpop.f32.mrf.mxu0
        %717 = vdwg.mxu0
        %718 = vmatpush.bf16.msra.mxu0 0
        %719 = vmatpush.bf16.msra.mxu0 0
        %720 = vmatpush.bf16.msra.mxu0 0
        %721 = vmatpush.bf16.msra.mxu0 0
        %722 = vmatpush.bf16.msra.mxu0 0
        %723 = vmatpush.bf16.msra.mxu0 0
        %724 = vmatpush.bf16.msra.mxu0 0
        %725 = vmatpush.bf16.msra.mxu0 %v703
        %726 = vmatmul.bf16.gmra.mxu0 %v697
        %v727 = vpop.f32.mrf.mxu0
        %v728 = vadd.f32 %v694, %v727
        %v729 = vpop.f32.mrf.mxu0
        %730 = vdwg.mxu0
        %732 = vset.pattern.permute.xlu0 0
        %733 = vperm.xlu0 %732, %v337
        %v734 = vpop.permute.xlu0 %733
        %737 = vset.pattern.permute.xlu0 0
        %738 = vperm.xlu0 %737, %v339
        %v739 = vpop.permute.xlu0 %738
        %742 = vset.pattern.permute.xlu0 0
        %743 = vperm.xlu0 %742, %v342
        %v744 = vpop.permute.xlu0 %743
        %747 = vset.pattern.permute.xlu0 0
        %748 = vperm.xlu0 %747, %v344
        %v749 = vpop.permute.xlu0 %748
        %v751 = vperm.slane %v715, 0
        %v752 = vperm.slane %v728, 0
        %v753 = vadd.f32 %v734, %v751
        %v754 = vadd.f32 %v734, %v752
        %v755 = vadd.f32 %v739, %v751
        %v756 = vadd.f32 %v739, %v752
        %v757 = vadd.f32 %v744, %v751
        %v758 = vadd.f32 %v744, %v752
        %v759 = vadd.f32 %v749, %v751
        %v760 = vadd.f32 %v749, %v752
        %v761 = vsub.f32 0.0, %v753
        %v762 = vsub.f32 0.0, %v754
        %v763 = vsub.f32 0.0, %v755
        %v764 = vsub.f32 0.0, %v756
        %v765 = vsub.f32 0.0, %v757
        %v766 = vsub.f32 0.0, %v758
        %v767 = vsub.f32 0.0, %v759
        %v768 = vsub.f32 0.0, %v760
        %v769 = vmul.f32 %v761, 1.442695
        %v770 = vpow.pop %v769
        %v771 = vmul.f32 %v762, 1.442695
        %v772 = vpow.pop %v771
        %v773 = vmul.f32 %v763, 1.442695
        %v774 = vpow.pop %v773
        %v775 = vmul.f32 %v764, 1.442695
        %v776 = vpow.pop %v775
        %v777 = vmul.f32 %v765, 1.442695
        %v778 = vpow.pop %v777
        %v779 = vmul.f32 %v766, 1.442695
        %v780 = vpow.pop %v779
        %v781 = vmul.f32 %v767, 1.442695
        %v782 = vpow.pop %v781
        %v783 = vmul.f32 %v768, 1.442695
        %v784 = vpow.pop %v783
        %v785 = vadd.f32 %v770, 1.0
        %v786 = vadd.f32 %v772, 1.0
        %v787 = vadd.f32 %v774, 1.0
        %v788 = vadd.f32 %v776, 1.0
        %v789 = vadd.f32 %v778, 1.0
        %v790 = vadd.f32 %v780, 1.0
        %v791 = vadd.f32 %v782, 1.0
        %v792 = vadd.f32 %v784, 1.0
        %v793 = vrcp.pop %v785
        %v794 = vrcp.pop %v786
        %v795 = vrcp.pop %v787
        %v796 = vrcp.pop %v788
        %v797 = vrcp.pop %v789
        %v798 = vrcp.pop %v790
        %v799 = vrcp.pop %v791
        %v800 = vrcp.pop %v792
        %v801 = vmul.f32 %v793, %v227
        %v802 = vmul.f32 %v794, %v228
        %v803 = vmul.f32 %v795, %v229
        %v804 = vmul.f32 %v796, %v230
        %v805 = vmul.f32 %v797, %v231
        %v806 = vmul.f32 %v798, %v232
        %v807 = vmul.f32 %v799, %v233
        %v808 = vmul.f32 %v800, %v234
        %v809 = vadd.f32 %v801, %v227
        %v810 = vadd.f32 %v802, %v228
        %v811 = vadd.f32 %v803, %v229
        %v812 = vadd.f32 %v804, %v230
        %v813 = vadd.f32 %v805, %v231
        %v814 = vadd.f32 %v806, %v232
        %v815 = vadd.f32 %v807, %v233
        %v816 = vadd.f32 %v808, %v234
        %817 = vst [vmem:[%s223] sm:$0xff] %v809
        %818 = vst [vmem:[%s223 + $0x8] sm:$0xff] %v810
        %819 = vst [vmem:[%s223 + $0x10] sm:$0xff] %v811
        %820 = vst [vmem:[%s223 + $0x18] sm:$0xff] %v812
        %821 = vst [vmem:[%s223 + $0x20] sm:$0xff] %v813
        %822 = vst [vmem:[%s223 + $0x28] sm:$0xff] %v814
        %823 = vst [vmem:[%s223 + $0x30] sm:$0xff] %v815
        %824 = vst [vmem:[%s223 + $0x38] sm:$0xff] %v816
        %s825 = sand.u32 %s97, 1
        %s826 = scalar_lea.sflag [#allocation4], %s825
        %s827 = sand.u32 %s97, 1
        %s828 = smul.addr %s827, 64
        %s829 = scalar_lea.vmem [#allocation8], %s828
        // Predicated region
        $region45: #{tpu_custom_call.1} parent=31 // pred_check
          %p830 = pneg %p107
        $region46: #{tpu_custom_call.1} parent=31 // pred_check_branch
          %832 = sbr.rel (%p830) target = $region48
        $region47: #{tpu_custom_call.1} parent=31 // pred_region
          %s833 = smul.u32 2, %s21
          %835 = vsyncadd %s826, 0
          %s836 = smul.addr %s833, 8
          %s837 = scalar_lea.hbm %s3, %s836
          %s838 = sshll.u32 %s829, 4
          %s839 = int_to_ptr.vmem [resolvable:$true] %s838
          %s840 = sshll.u32 %s837, 4
          %s841 = int_to_ptr.hbm [resolvable:$true] %s840
          %846 = dma.vmem_to_hbm [thread:$0]  %s839, 1024, %s841, %s826, 256, 512, 16
        $region48: #{tpu_custom_call.1} parent=31 // pred_fallthru
          _
      $region32: #{tpu_custom_call.1} parent=5 // pred_fallthru
        _
      %p847 = scmp.le.s32.totalorder 2, %s16
      // Predicated region
      $region49: #{tpu_custom_call.1} parent=5 // pred_check
        %p848 = pneg %p847
      $region50: #{tpu_custom_call.1} parent=5 // pred_check_branch
        %850 = sbr.rel (%p848) target = $region52
      $region51: #{tpu_custom_call.1} parent=5 // pred_region
        %s851 = ssub.s32 %s16, 2
        // Predicated region
        $region53: #{tpu_custom_call.1} parent=51 // pred_check
          %p852 = pneg %p113
        $region54: #{tpu_custom_call.1} parent=51 // pred_check_branch
          %854 = sbr.rel (%p852) target = $region56
        $region55: #{tpu_custom_call.1} parent=51 // pred_region
          %s855 = sand.u32 %s98, 1
          %s856 = scalar_lea.sflag [#allocation4], %s855
          %s857 = sand.u32 %s98, 1
          %s858 = smul.addr %s857, 64
          %s859 = scalar_lea.vmem [#allocation8], %s858
          %861 = dma.done %s856, 1024
        $region56: #{tpu_custom_call.1} parent=51 // pred_fallthru
          _
      $region52: #{tpu_custom_call.1} parent=5 // pred_fallthru
        _
    $region6: #{tpu_custom_call.1} parent=1 // loop_footer
      %s20 = sadd.s32 1, %s16
    $region7: #{tpu_custom_call.1} parent=1 // loop_footer_branch
      %15 = sbr.rel target = $region3
    $region8: #{tpu_custom_call.1} parent=1 // loop_exit
      _
    %862 = vsyncpa [#allocation3], 1
    %s863 = scalar_lea.sflag [#allocation3], 1
    %864 = vsyncpa %s863, 1
    %865 = vsyncpa [#allocation6], 1
    %866 = vsyncpa [#allocation4], 1
    %s867 = scalar_lea.sflag [#allocation4], 1
    %868 = vsyncpa %s867, 1

</llo_original>
